<compile_context>
chip_gen: v7x
topology: tpu7x:2x2x1
jax: 0.10.0
libtpu: 0.0.40
codegen_flags: <defaults>
</compile_context>

<pallas_src>
import functools

import jax
import jax.numpy as jnp
from jax.experimental import pallas as pl
from jax.experimental.pallas import tpu as pltpu

_LANE = 128
_G_SUBLANE = 16                      # bf16 sublane packing for the pool matrix
_VMEM_TILE_BUDGET = 36 * 1024 * 1024  # conservative across v5e/v6e/v7x
_VMEM_LIMIT_BYTES = 48 * 1024 * 1024  # scoped limit requested from the compiler
_X_RESIDENT_MAX_BYTES = 8 * 1024 * 1024


def _round_up(x, m):
    return (x + m - 1) // m * m


def _pick_tiles(n, f_pad, h_pad):
    """Pick (tm, tk, x_resident, n_pad) against the VMEM budget."""
    n128 = _round_up(n, _LANE)
    for tm in (1024, 512, 256, 128):
        for tk in (2048, 1024, 512, 256, 128):
            if tm > n128 or tk > n128 or tk < tm:
                continue
            n_pad = _round_up(n, tk)          # tk, tm are pow2 multiples of 128
            x_res_bytes = n_pad * f_pad * 2
            x_resident = x_res_bytes <= _X_RESIDENT_MAX_BYTES
            vmem = (2 * tm * tk                    # int8 A tiles, double-buffered
                    + 2 * tm * h_pad * 2           # bf16 output tiles
                    + 2 * tm * f_pad * 2           # bf16 root-feature tiles
                    + tm * f_pad * 4               # f32 aggregation scratch
                    + 2 * (2 * f_pad) * h_pad * 2  # packed weights (bf16)
                    + 2 * (x_res_bytes if x_resident else tk * f_pad * 2))
            if vmem <= _VMEM_TILE_BUDGET:
                return tm, tk, x_resident, n_pad
    n_pad = n128
    return 128, 128, n_pad * f_pad * 2 <= _X_RESIDENT_MAX_BYTES, n_pad


# ---------------------------------------------------------------------------
# Pallas kernels
# ---------------------------------------------------------------------------
def _graphconv_kernel(adj_ref, xk_ref, xi_ref, w_ref, b_ref, o_ref, acc_ref,
                      *, apply_relu, x_resident, tk):
    """Tiled fused GraphConv layer.

    grid = (N/tm rows ["parallel"], N/tk contraction ["arbitrary"]).
    acc_ref accumulates the neighbour aggregation (A @ X) tile in f32; the
    finalize step applies the fused [root | nbr] weight matmul, bias and relu.
    """
    k = pl.program_id(1)

    @pl.when(k == 0)
    def _():
        acc_ref[...] = jnp.zeros_like(acc_ref)

    # int8 adjacency in HBM -> bf16 in VMEM (cast rides in spare VPU slots of a
    # memory-bound loop); f32 accumulation on the MXU.
    a_tile = adj_ref[...].astype(jnp.bfloat16)
    if x_resident:
        start = pl.multiple_of(k * tk, tk)
        xk = xk_ref[pl.ds(start, tk), :]
    else:
        xk = xk_ref[...]
    acc_ref[...] += jnp.dot(a_tile, xk, preferred_element_type=jnp.float32)

    @pl.when(k == pl.num_programs(1) - 1)
    def _():
        # Fused root + neighbour matmul: [x_i | agg] @ [[W_root], [W_nbr]].
        feats = jnp.concatenate(
            [xi_ref[...], acc_ref[...].astype(jnp.bfloat16)], axis=-1)
        out = jnp.dot(feats, w_ref[...],
                      preferred_element_type=jnp.float32) + b_ref[...]
        if apply_relu:
            out = jnp.maximum(out, 0.0)
        o_ref[...] = out.astype(o_ref.dtype)


def _pool_linear_kernel(pool_ref, h_ref, inv_ref, w_ref, b_ref, o_ref, acc_ref):
    """Fused global_mean_pool + Linear, tiled over nodes.

    Sum-pool accumulates with an exact 0/1 bf16 one-hot; the 1/count scaling
    and final (small) Linear run in f32 in the finalize.
    """
    k = pl.program_id(0)

    @pl.when(k == 0)
    def _():
        acc_ref[...] = jnp.zeros_like(acc_ref)

    acc_ref[...] += jnp.dot(pool_ref[...], h_ref[...],
                            preferred_element_type=jnp.float32)

    @pl.when(k == pl.num_programs(0) - 1)
    def _():
        mean = acc_ref[...] * inv_ref[...]          # f32 mean pool
        logits = jnp.dot(mean, w_ref[...],
                         preferred_element_type=jnp.float32) + b_ref[...]
        o_ref[...] = logits


# ---------------------------------------------------------------------------
# pallas_call wrappers
# ---------------------------------------------------------------------------
def graphconv(adj, x, w_cat, bias, *, apply_relu, tm, tk, x_resident):
    n_pad = adj.shape[0]
    f_pad = x.shape[1]
    h_pad = w_cat.shape[1]
    grid = (n_pad // tm, n_pad // tk)
    kernel = functools.partial(_graphconv_kernel, apply_relu=apply_relu,
                               x_resident=x_resident, tk=tk)

    if x_resident:
        # Whole X stays in VMEM: no N/tm-fold HBM re-read of the aggregation operand.
        xk_spec = pl.BlockSpec((n_pad, f_pad), lambda i, k: (0, 0))
    else:
        xk_spec = pl.BlockSpec((tk, f_pad), lambda i, k: (k, 0))

    x_reads = 1 if x_resident else grid[0]
    flops = 2 * n_pad * n_pad * f_pad + 2 * n_pad * (2 * f_pad) * h_pad
    bytes_accessed = (n_pad * n_pad                      # int8 adjacency
                      + (x_reads + 1) * n_pad * f_pad * 2
                      + n_pad * h_pad * 2
                      + 2 * f_pad * h_pad * 2 + h_pad * 4)

    return pl.pallas_call(
        kernel,
        out_shape=jax.ShapeDtypeStruct((n_pad, h_pad), jnp.bfloat16),
        grid_spec=pltpu.PrefetchScalarGridSpec(
            num_scalar_prefetch=0,
            grid=grid,
            in_specs=[
                pl.BlockSpec((tm, tk), lambda i, k: (i, k)),        # A tile (int8)
                xk_spec,                                            # X (agg operand)
                pl.BlockSpec((tm, f_pad), lambda i, k: (i, 0)),     # X rows (root)
                pl.BlockSpec((2 * f_pad, h_pad), lambda i, k: (0, 0)),  # [Wr;Wn]
                pl.BlockSpec((1, h_pad), lambda i, k: (0, 0)),      # bias (f32)
            ],
            out_specs=pl.BlockSpec((tm, h_pad), lambda i, k: (i, 0)),
            scratch_shapes=[pltpu.VMEM((tm, f_pad), jnp.float32)],
        ),
        compiler_params=pltpu.CompilerParams(
            dimension_semantics=("parallel", "arbitrary"),
            vmem_limit_bytes=_VMEM_LIMIT_BYTES),
        cost_estimate=pl.CostEstimate(flops=flops, transcendentals=0,
                                      bytes_accessed=bytes_accessed),
    )(adj, x, x, w_cat, bias)


def pool_linear(pool_mat, h, inv_counts, w_lin, b_lin, *, tile):
    g_pad, n_pad = pool_mat.shape
    h_pad = h.shape[1]
    c_pad = w_lin.shape[1]
    grid = (n_pad // tile,)
    return pl.pallas_call(
        _pool_linear_kernel,
        out_shape=jax.ShapeDtypeStruct((g_pad, c_pad), jnp.float32),
        grid_spec=pltpu.PrefetchScalarGridSpec(
            num_scalar_prefetch=0,
            grid=grid,
            in_specs=[
                pl.BlockSpec((g_pad, tile), lambda k: (0, k)),     # one-hot columns
                pl.BlockSpec((tile, h_pad), lambda k: (k, 0)),     # H rows
                pl.BlockSpec((g_pad, 1), lambda k: (0, 0)),        # 1/count (f32)
                pl.BlockSpec((h_pad, c_pad), lambda k: (0, 0)),    # W_lin (f32)
                pl.BlockSpec((1, c_pad), lambda k: (0, 0)),        # b_lin (f32)
            ],
            out_specs=pl.BlockSpec((g_pad, c_pad), lambda k: (0, 0)),
            scratch_shapes=[pltpu.VMEM((g_pad, h_pad), jnp.float32)],
        ),
        compiler_params=pltpu.CompilerParams(
            dimension_semantics=("arbitrary",),
            vmem_limit_bytes=_VMEM_LIMIT_BYTES),
    )(pool_mat, h, inv_counts, w_lin, b_lin)


# ---------------------------------------------------------------------------
# Graph preprocessing (built ONCE per graph, reused across forward calls)
# ---------------------------------------------------------------------------
def prepare_graph(x, edge_index, batch, num_graphs, hidden_channels):
    n, f = x.shape
    f_pad = _round_up(f, _LANE)
    h_pad = _round_up(hidden_channels, _LANE)
    tm, tk, x_resident, n_pad = _pick_tiles(n, max(f_pad, h_pad), h_pad)

    src, dst = edge_index[0], edge_index[1]

    # Dense padded adjacency scattered directly into int8 storage:
    # A[dst, src] += 1 (exact for edge multiplicities < 128).
    adj = (jnp.zeros((n_pad, n_pad), jnp.int8)
           .at[dst, src].add(jnp.ones_like(dst, dtype=jnp.int8)))

    # Zero-padded bf16 node features.
    xp = jnp.zeros((n_pad, f_pad), jnp.bfloat16).at[:n, :f].set(
        x.astype(jnp.bfloat16))

    # Exact 0/1 one-hot pool matrix (bf16) + f32 reciprocal counts.
    g_pad = _round_up(num_graphs, _G_SUBLANE)
    one_hot = (batch[None, :] == jnp.arange(num_graphs)[:, None])
    pool = (jnp.zeros((g_pad, n_pad), jnp.bfloat16)
            .at[:num_graphs, :n].set(one_hot.astype(jnp.bfloat16)))
    counts = one_hot.sum(axis=1).astype(jnp.float32)
    inv_counts = (jnp.zeros((g_pad, 1), jnp.float32)
                  .at[:num_graphs, 0].set(1.0 / jnp.maximum(counts, 1.0)))

    return dict(adj=adj, x=xp, pool=pool, inv_counts=inv_counts,
                n=n, f=f, n_pad=n_pad, f_pad=f_pad, g_pad=g_pad,
                tm=tm, tk=tk, x_resident=x_resident, num_graphs=num_graphs)


# ---------------------------------------------------------------------------
# Parameter packing / padding helpers (plain JAX glue)
# ---------------------------------------------------------------------------
def _pack_conv_weights(w_root, w_nbr, f_pad, h_pad):
    f, h = w_root.shape
    w = jnp.zeros((2 * f_pad, h_pad), jnp.float32)
    w = w.at[:f, :h].set(w_root)
    w = w.at[f_pad:f_pad + f, :h].set(w_nbr)
    return w.astype(jnp.bfloat16)


def _pad_matrix_f32(w, r_pad, c_pad):
    r, c = w.shape
    return jnp.zeros((r_pad, c_pad), jnp.float32).at[:r, :c].set(w)


def _pad_bias(b, c_pad):
    return jnp.zeros((1, c_pad), jnp.float32).at[:, :b.shape[1]].set(b)


# ---------------------------------------------------------------------------
# Model forward
# ---------------------------------------------------------------------------
def gcn_forward(params, graph):
    hidden = params["w_root1"].shape[1]
    classes = params["w_lin"].shape[1]
    f_pad = graph["f_pad"]
    h_pad = _round_up(hidden, _LANE)
    c_pad = _round_up(classes, _LANE)

    w1 = _pack_conv_weights(params["w_root1"], params["w_nbr1"], f_pad, h_pad)
    w2 = _pack_conv_weights(params["w_root2"], params["w_nbr2"], h_pad, h_pad)
    w3 = _pack_conv_weights(params["w_root3"], params["w_nbr3"], h_pad, h_pad)
    b1 = _pad_bias(params["b1"], h_pad)
    b2 = _pad_bias(params["b2"], h_pad)
    b3 = _pad_bias(params["b3"], h_pad)
    w_lin = _pad_matrix_f32(params["w_lin"], h_pad, c_pad)
    b_lin = _pad_bias(params["b_lin"], c_pad)

    adj = graph["adj"]
    tm, tk, xres = graph["tm"], graph["tk"], graph["x_resident"]

    h = graphconv(adj, graph["x"], w1, b1, apply_relu=True,
                  tm=tm, tk=tk, x_resident=xres)
    h = graphconv(adj, h, w2, b2, apply_relu=True,
                  tm=tm, tk=tk, x_resident=xres)
    h = graphconv(adj, h, w3, b3, apply_relu=False,
                  tm=tm, tk=tk, x_resident=xres)
    # global_mean_pool + (identity dropout, eval mode) + Linear, fused.
    logits = pool_linear(graph["pool"], h, graph["inv_counts"], w_lin, b_lin,
                         tile=tk)
    return logits[:graph["num_graphs"], :classes]


def init_params(key, num_features, hidden, num_classes):
    ks = jax.random.split(key, 11)
    scale = 0.1

    def w(k, shape):
        return (scale * jax.random.normal(k, shape)).astype(jnp.float32)

    return {
        "w_root1": w(ks[0], (num_features, hidden)),
        "w_nbr1": w(ks[1], (num_features, hidden)),
        "b1": w(ks[2], (1, hidden)),
        "w_root2": w(ks[3], (hidden, hidden)),
        "w_nbr2": w(ks[4], (hidden, hidden)),
        "b2": w(ks[5], (1, hidden)),
        "w_root3": w(ks[6], (hidden, hidden)),
        "w_nbr3": w(ks[7], (hidden, hidden)),
        "b3": w(ks[8], (1, hidden)),
        "w_lin": w(ks[9], (hidden, num_classes)),
        "b_lin": w(ks[10], (1, num_classes)),
    }


def _reference_forward(params, x, edge_index, batch, num_graphs):
    """Pure-JAX f32 reference (same GraphConv / pooling semantics)."""
    n = x.shape[0]
    src, dst = edge_index[0], edge_index[1]
    adj = jnp.zeros((n, n), jnp.float32).at[dst, src].add(1.0)
    one_hot = (batch[None, :] == jnp.arange(num_graphs)[:, None]).astype(
        jnp.float32)
    pool = one_hot / jnp.maximum(one_hot.sum(axis=1, keepdims=True), 1.0)
    h = x
    for i, relu in ((1, True), (2, True), (3, False)):
        h = (h @ params[f"w_root{i}"] + (adj @ h) @ params[f"w_nbr{i}"]
             + params[f"b{i}"])
        if relu:
            h = jnp.maximum(h, 0.0)
    return (pool @ h) @ params["w_lin"] + params["b_lin"]


if __name__ == "__main__":
    num_nodes = 16
    num_features = 4
    hidden_channels = 32
    num_classes = 3
    num_graphs = 2

    key = jax.random.PRNGKey(0)
    k_x, k_p = jax.random.split(key)

    # Deterministic node features.
    x = jax.random.normal(k_x, (num_nodes, num_features), dtype=jnp.float32)

    # Two graphs of 8 nodes each: directed ring edges within each graph (both
    # directions) -> edge_index shape (2, E).
    src_list, dst_list = [], []
    for g in range(num_graphs):
        base = g * 8
        for i in range(8):
            a, b = base + i, base + (i + 1) % 8
            src_list += [a, b]
            dst_list += [b, a]
    edge_index = jnp.array([src_list, dst_list], dtype=jnp.int32)

    # batch[i] = graph id of node i.
    batch = jnp.array([0] * 8 + [1] * 8, dtype=jnp.int32)

    params = init_params(k_p, num_features, hidden_channels, num_classes)

    # Graph structure (adjacency / pool) is built once and reused.
    graph = prepare_graph(x, edge_index, batch, num_graphs, hidden_channels)

    logits = gcn_forward(params, graph)
    jax.block_until_ready(logits)

    assert logits.shape == (num_graphs, num_classes)
    assert bool(jnp.all(jnp.isfinite(logits)))

    # Sanity check against a pure-JAX f32 reference (loose tol: bf16 weights).
    ref = _reference_forward(params, x, edge_index, batch, num_graphs)
    assert bool(jnp.allclose(logits, ref, atol=3e-2, rtol=3e-2))

    print("KERNEL_OK")
</pallas_src>

<mosaic_0001>
module attributes {stable_mosaic.version = 11 : i64} {
  func.func @_graphconv_kernel(%arg0: i32, %arg1: i32, %arg2: memref<128x128xi8, #tpu.memory_space<vmem>>, %arg3: memref<128x128xbf16, #tpu.memory_space<vmem>>, %arg4: memref<128x128xbf16, #tpu.memory_space<vmem>>, %arg5: memref<256x128xbf16, #tpu.memory_space<vmem>>, %arg6: memref<1x128xf32, #tpu.memory_space<vmem>>, %arg7: memref<128x128xbf16, #tpu.memory_space<vmem>>, %arg8: memref<128x128xf32, #tpu.memory_space<vmem>>) attributes {dimension_semantics = [#tpu.dimension_semantics<parallel>, #tpu.dimension_semantics<arbitrary>], iteration_bounds = array<i64: 1, 1>, scalar_prefetch = 0 : i64, scratch_operands = 1 : i64, tpu.core_type = #tpu.core_type<tc>, window_params = [{transform_indices = @transform_0, window_bounds = array<i64: 128, 128>}, {pipeline_mode = #tpu.pipeline_mode<synchronous>, transform_indices = @transform_1, window_bounds = array<i64: 128, 128>}, {transform_indices = @transform_2, window_bounds = array<i64: 128, 128>}, {pipeline_mode = #tpu.pipeline_mode<synchronous>, transform_indices = @transform_3, window_bounds = array<i64: 256, 128>}, {pipeline_mode = #tpu.pipeline_mode<synchronous>, transform_indices = @transform_4, window_bounds = array<i64: 1, 128>}, {transform_indices = @transform_5, window_bounds = array<i64: 128, 128>}]} {
    %c0_i32 = arith.constant 0 : i32
    %0 = arith.cmpi eq, %arg1, %c0_i32 : i32
    %1 = arith.extui %0 : i1 to i32
    %c0_i32_0 = arith.constant 0 : i32
    %2 = arith.cmpi ne, %1, %c0_i32_0 : i32
    scf.if %2 {
      %cst_9 = arith.constant 0.000000e+00 : f32
      %16 = vector.broadcast %cst_9 : f32 to vector<128x128xf32>
      %c0_10 = arith.constant 0 : index
      %c0_11 = arith.constant 0 : index
      %17 = vector.load %arg8[%c0_10, %c0_11] : memref<128x128xf32, #tpu.memory_space<vmem>>, vector<128x128xf32>
      tpu.vector_store %arg8[%c0_10, %c0_11], %16 {strides = array<i32>} : memref<128x128xf32, #tpu.memory_space<vmem>>, vector<128x128xf32>,
    } else {
    }
    %c0 = arith.constant 0 : index
    %c0_1 = arith.constant 0 : index
    %3 = vector.load %arg2[%c0, %c0_1] : memref<128x128xi8, #tpu.memory_space<vmem>>, vector<128x128xi8>
    %4 = arith.sitofp %3 : vector<128x128xi8> to vector<128x128xbf16>
    %c128_i32 = arith.constant 128 : i32
    %5 = arith.muli %arg1, %c128_i32 : i32
    %6 = tpu.assume_multiple %5, 128 : i32
    %7 = arith.index_cast %6 : i32 to index
    %c0_2 = arith.constant 0 : index
    %8 = vector.load %arg3[%7, %c0_2] : memref<128x128xbf16, #tpu.memory_space<vmem>>, vector<128x128xbf16>
    %c0_3 = arith.constant 0 : index
    %c0_4 = arith.constant 0 : index
    %9 = vector.load %arg8[%c0_3, %c0_4] : memref<128x128xf32, #tpu.memory_space<vmem>>, vector<128x128xf32>
    %cst = arith.constant dense<0.000000e+00> : vector<128x128xf32>
    %10 = tpu.matmul %4, %8, %cst {dimension_numbers = #tpu.dot_dimension_numbers<[1], [0], [0], [1], [0, 0, 1, 1], [], []>} : vector<128x128xbf16>, vector<128x128xbf16>, vector<128x128xf32> -> vector<128x128xf32>
    %11 = arith.addf %9, %10 : vector<128x128xf32>
    %c0_5 = arith.constant 0 : index
    %c0_6 = arith.constant 0 : index
    %12 = vector.load %arg8[%c0_5, %c0_6] : memref<128x128xf32, #tpu.memory_space<vmem>>, vector<128x128xf32>
    tpu.vector_store %arg8[%c0_5, %c0_6], %11 {strides = array<i32>} : memref<128x128xf32, #tpu.memory_space<vmem>>, vector<128x128xf32>,
    %c0_i32_7 = arith.constant 0 : i32
    %13 = arith.cmpi eq, %arg1, %c0_i32_7 : i32
    %14 = arith.extui %13 : i1 to i32
    %c0_i32_8 = arith.constant 0 : i32
    %15 = arith.cmpi ne, %14, %c0_i32_8 : i32
    scf.if %15 {
      %c0_9 = arith.constant 0 : index
      %c0_10 = arith.constant 0 : index
      %16 = vector.load %arg4[%c0_9, %c0_10] : memref<128x128xbf16, #tpu.memory_space<vmem>>, vector<128x128xbf16>
      %c0_11 = arith.constant 0 : index
      %c0_12 = arith.constant 0 : index
      %17 = vector.load %arg8[%c0_11, %c0_12] : memref<128x128xf32, #tpu.memory_space<vmem>>, vector<128x128xf32>
      %18 = arith.truncf %17 : vector<128x128xf32> to vector<128x128xbf16>
      %19 = tpu.concatenate %16, %18 in 1 : vector<128x128xbf16>, vector<128x128xbf16> -> vector<128x256xbf16>
      %c0_13 = arith.constant 0 : index
      %c0_14 = arith.constant 0 : index
      %20 = vector.load %arg5[%c0_13, %c0_14] : memref<256x128xbf16, #tpu.memory_space<vmem>>, vector<256x128xbf16>
      %cst_15 = arith.constant dense<0.000000e+00> : vector<128x128xf32>
      %21 = tpu.matmul %19, %20, %cst_15 {dimension_numbers = #tpu.dot_dimension_numbers<[1], [0], [0], [1], [0, 0, 1, 1], [], []>} : vector<128x256xbf16>, vector<256x128xbf16>, vector<128x128xf32> -> vector<128x128xf32>
      %c0_16 = arith.constant 0 : index
      %c0_17 = arith.constant 0 : index
      %22 = vector.load %arg6[%c0_16, %c0_17] : memref<1x128xf32, #tpu.memory_space<vmem>>, vector<1x128xf32>
      %23 = vector.broadcast %22 : vector<1x128xf32> to vector<128x128xf32>
      %24 = arith.addf %21, %23 : vector<128x128xf32>
      %cst_18 = arith.constant 0.000000e+00 : f32
      %25 = vector.broadcast %cst_18 : f32 to vector<128x128xf32>
      %26 = arith.maximumf %24, %25 : vector<128x128xf32>
      %27 = arith.truncf %26 : vector<128x128xf32> to vector<128x128xbf16>
      %c0_19 = arith.constant 0 : index
      %c0_20 = arith.constant 0 : index
      %28 = vector.load %arg7[%c0_19, %c0_20] : memref<128x128xbf16, #tpu.memory_space<vmem>>, vector<128x128xbf16>
      tpu.vector_store %arg7[%c0_19, %c0_20], %27 {strides = array<i32>} : memref<128x128xbf16, #tpu.memory_space<vmem>>, vector<128x128xbf16>,
    } else {
    }
    return
  }
  func.func @transform_0(%arg0: i32, %arg1: i32) -> (i32, i32) {
    %c0_i32 = arith.constant 0 : i32
    return %arg0, %arg1 : i32, i32
  }
  func.func @transform_1(%arg0: i32, %arg1: i32) -> (i32, i32) {
    %c0_i32 = arith.constant 0 : i32
    %c0_i32_0 = arith.constant 0 : i32
    %c0_i32_1 = arith.constant 0 : i32
    return %c0_i32, %c0_i32_0 : i32, i32
  }
  func.func @transform_2(%arg0: i32, %arg1: i32) -> (i32, i32) {
    %c0_i32 = arith.constant 0 : i32
    %c0_i32_0 = arith.constant 0 : i32
    return %arg0, %c0_i32 : i32, i32
  }
  func.func @transform_3(%arg0: i32, %arg1: i32) -> (i32, i32) {
    %c0_i32 = arith.constant 0 : i32
    %c0_i32_0 = arith.constant 0 : i32
    %c0_i32_1 = arith.constant 0 : i32
    return %c0_i32, %c0_i32_0 : i32, i32
  }
  func.func @transform_4(%arg0: i32, %arg1: i32) -> (i32, i32) {
    %c0_i32 = arith.constant 0 : i32
    %c0_i32_0 = arith.constant 0 : i32
    %c0_i32_1 = arith.constant 0 : i32
    return %c0_i32, %c0_i32_0 : i32, i32
  }
  func.func @transform_5(%arg0: i32, %arg1: i32) -> (i32, i32) {
    %c0_i32 = arith.constant 0 : i32
    %c0_i32_0 = arith.constant 0 : i32
    return %arg0, %c0_i32 : i32, i32
  }
}

</mosaic_0001>

<llo_original>
// kernel: tpu_custom_call.1
$region0: #{tpu_custom_call.1}
  #allocation0 [shape = 'u32[]', space=smem, size = 0x4, offset = 0x4, fixed_abs, tag = 'smem constant byte address 0x4 - core index']
  #allocation1 [shape = 'u32[144,128]{1,0:T(1,128)}', space=vmem, size = 0x12000, scoped, tag = 'internal scratch']
  #allocation2 [shape = 'f32[128,128]{1,0:T(8,128)}', space=vmem, size = 0x10000, scoped, tag = 'scratch operand']
  %s0 = inlined_call_operand.hbm [shape: s8[128,128], index: 0, kind: input, shape index: {}]
  %s1 = inlined_call_operand.hbm [shape: bf16[128,128], index: 1, kind: input, shape index: {}]
  %s2 = inlined_call_operand.hbm [shape: bf16[128,128], index: 2, kind: input, shape index: {}]
  %s3 = inlined_call_operand.hbm [shape: bf16[256,128], index: 3, kind: input, shape index: {}]
  %s4 = inlined_call_operand.vmem [shape: f32[1,128], index: 4, kind: input, shape index: {}]
  %s5 = inlined_call_operand.hbm [shape: bf16[128,128], index: 5, kind: output, shape index: {}]
  %s6 = sld [smem:[#allocation0]]
  $region54: #{tpu_custom_call.1} parent=0
    _
  %s8 = ssub.s32 1, %s6
  %s9 = scalar_select 0, %s8, %s6
  $region1: #{tpu_custom_call.1} parent=0
    #allocation3 [shape = 'u8[16384]{0}', space=vmem, size = 0x4000, scoped, tag = 'input window, operand 0, single buffered']
    #allocation4 [shape = 's32[1]{0}', space=sflag, size = 0x4, scoped, tag = 'scoped memory for tpu_custom_call.1']
    #allocation5 [shape = 's32[1]{0}', space=sflag, size = 0x4, scoped, tag = 'scoped memory for tpu_custom_call.1']
    #allocation6 [shape = 'u8[32768]{0}', space=vmem, size = 0x8000, scoped, tag = 'input window, operand 1, single buffered']
    #allocation7 [shape = 's32[1]{0}', space=sflag, size = 0x4, scoped, tag = 'scoped memory for tpu_custom_call.1']
    #allocation8 [shape = 'u8[32768]{0}', space=vmem, size = 0x8000, scoped, tag = 'input window, operand 2, single buffered']
    #allocation9 [shape = 'u8[65536]{0}', space=vmem, size = 0x10000, scoped, tag = 'input window, operand 3, single buffered']
    #allocation10 [shape = 's32[1]{0}', space=sflag, size = 0x4, scoped, tag = 'scoped memory for tpu_custom_call.1']
    #allocation11 [shape = 'u8[32768]{0}', space=vmem, size = 0x8000, scoped, tag = 'output window, operand 0, single buffered']
    %10 = vsyncpa [#allocation4], 0
    %11 = vsyncpa [#allocation7], 0
    %12 = vsyncpa [#allocation10], 0
    %13 = vsyncpa [#allocation5], 0
    // Predicated region
    $region2: #{tpu_custom_call.1} parent=1 // pred_check
      _
    $region3: #{tpu_custom_call.1} parent=1 // pred_check_branch
      %15 = sbr.rel (0) target = $region5
    $region4: #{tpu_custom_call.1} parent=1 // pred_region
      %s17 = ssub.s32 512, 512
      %18 = vsyncadd [#allocation4], %s17
      %s19 = sshll.u32 [#allocation3], 4
      %s20 = int_to_ptr.vmem [resolvable:$true] %s19
      %25 = dma.hbm_to_vmem [thread:$0]  %s0, 512, %s20, [#allocation4], 128, 128, 8
    $region5: #{tpu_custom_call.1} parent=1 // pred_fallthru
      _
    // Predicated region
    $region6: #{tpu_custom_call.1} parent=1 // pred_check
      _
    $region7: #{tpu_custom_call.1} parent=1 // pred_check_branch
      %27 = sbr.rel (0) target = $region9
    $region8: #{tpu_custom_call.1} parent=1 // pred_region
      %s29 = ssub.s32 1024, 1024
      %30 = vsyncadd [#allocation7], %s29
      %s31 = sshll.u32 [#allocation6], 4
      %s32 = int_to_ptr.vmem [resolvable:$true] %s31
      %37 = dma.hbm_to_vmem [thread:$0]  %s1, 1024, %s32, [#allocation7], 64, 64, 4
    $region9: #{tpu_custom_call.1} parent=1 // pred_fallthru
      _
    // Predicated region
    $region10: #{tpu_custom_call.1} parent=1 // pred_check
      _
    $region11: #{tpu_custom_call.1} parent=1 // pred_check_branch
      %39 = sbr.rel (0) target = $region13
    $region12: #{tpu_custom_call.1} parent=1 // pred_region
      %s41 = ssub.s32 1024, 1024
      %42 = vsyncadd [#allocation7], %s41
      %s43 = sshll.u32 [#allocation8], 4
      %s44 = int_to_ptr.vmem [resolvable:$true] %s43
      %49 = dma.hbm_to_vmem [thread:$0]  %s2, 1024, %s44, [#allocation7], 64, 64, 4
    $region13: #{tpu_custom_call.1} parent=1 // pred_fallthru
      _
    // Predicated region
    $region14: #{tpu_custom_call.1} parent=1 // pred_check
      _
    $region15: #{tpu_custom_call.1} parent=1 // pred_check_branch
      %51 = sbr.rel (0) target = $region17
    $region16: #{tpu_custom_call.1} parent=1 // pred_region
      %s53 = ssub.s32 2048, 2048
      %54 = vsyncadd [#allocation10], %s53
      %s55 = sshll.u32 [#allocation9], 4
      %s56 = int_to_ptr.vmem [resolvable:$true] %s55
      %61 = dma.hbm_to_vmem [thread:$0]  %s3, 2048, %s56, [#allocation10], 64, 64, 4
    $region17: #{tpu_custom_call.1} parent=1 // pred_fallthru
      _
    // Predicated region
    $region18: #{tpu_custom_call.1} parent=1 // pred_check
      _
    $region19: #{tpu_custom_call.1} parent=1 // pred_check_branch
      %63 = sbr.rel (0) target = $region21
    $region20: #{tpu_custom_call.1} parent=1 // pred_region
      _
    $region21: #{tpu_custom_call.1} parent=1 // pred_fallthru
      _
    // Predicated region
    $region22: #{tpu_custom_call.1} parent=1 // pred_check
      _
    $region23: #{tpu_custom_call.1} parent=1 // pred_check_branch
      %65 = sbr.rel (0) target = $region25
    $region24: #{tpu_custom_call.1} parent=1 // pred_region
      %66 = dma.done [#allocation4], 512
    $region25: #{tpu_custom_call.1} parent=1 // pred_fallthru
      _
    // Predicated region
    $region26: #{tpu_custom_call.1} parent=1 // pred_check
      _
    $region27: #{tpu_custom_call.1} parent=1 // pred_check_branch
      %68 = sbr.rel (0) target = $region29
    $region28: #{tpu_custom_call.1} parent=1 // pred_region
      %69 = dma.done [#allocation7], 1024
    $region29: #{tpu_custom_call.1} parent=1 // pred_fallthru
      _
    // Predicated region
    $region30: #{tpu_custom_call.1} parent=1 // pred_check
      _
    $region31: #{tpu_custom_call.1} parent=1 // pred_check_branch
      %71 = sbr.rel (0) target = $region33
    $region32: #{tpu_custom_call.1} parent=1 // pred_region
      %72 = dma.done [#allocation7], 1024
    $region33: #{tpu_custom_call.1} parent=1 // pred_fallthru
      _
    // Predicated region
    $region34: #{tpu_custom_call.1} parent=1 // pred_check
      _
    $region35: #{tpu_custom_call.1} parent=1 // pred_check_branch
      %74 = sbr.rel (0) target = $region37
    $region36: #{tpu_custom_call.1} parent=1 // pred_region
      %75 = dma.done [#allocation10], 2048
    $region37: #{tpu_custom_call.1} parent=1 // pred_fallthru
      _
    %p77 = scmp.eq.s32.totalorder 0, 0
    // Predicated region
    $region38: #{tpu_custom_call.1} parent=1 // pred_check
      %p78 = pneg %p77
    $region39: #{tpu_custom_call.1} parent=1 // pred_check_branch
      %80 = sbr.rel (%p78) target = $region41
    $region40: #{tpu_custom_call.1} parent=1 // pred_region
      %81 = vst [vmem:[#allocation2] sm:$0xff] 0.0
      %82 = vst [vmem:[#allocation2 + $0x8] sm:$0xff] 0.0
      %83 = vst [vmem:[#allocation2 + $0x10] sm:$0xff] 0.0
      %84 = vst [vmem:[#allocation2 + $0x18] sm:$0xff] 0.0
      %85 = vst [vmem:[#allocation2 + $0x20] sm:$0xff] 0.0
      %86 = vst [vmem:[#allocation2 + $0x28] sm:$0xff] 0.0
      %87 = vst [vmem:[#allocation2 + $0x30] sm:$0xff] 0.0
      %88 = vst [vmem:[#allocation2 + $0x38] sm:$0xff] 0.0
      %89 = vst [vmem:[#allocation2 + $0x40] sm:$0xff] 0.0
      %90 = vst [vmem:[#allocation2 + $0x48] sm:$0xff] 0.0
      %91 = vst [vmem:[#allocation2 + $0x50] sm:$0xff] 0.0
      %92 = vst [vmem:[#allocation2 + $0x58] sm:$0xff] 0.0
      %93 = vst [vmem:[#allocation2 + $0x60] sm:$0xff] 0.0
      %94 = vst [vmem:[#allocation2 + $0x68] sm:$0xff] 0.0
      %95 = vst [vmem:[#allocation2 + $0x70] sm:$0xff] 0.0
      %96 = vst [vmem:[#allocation2 + $0x78] sm:$0xff] 0.0
    $region41: #{tpu_custom_call.1} parent=1 // pred_fallthru
      _
    %v97 = vld [vmem:[#allocation3] sm:$0xff]
    %v98 = vld [vmem:[#allocation3 + $0x8] sm:$0xff]
    %v99 = vld [vmem:[#allocation3 + $0x10] sm:$0xff]
    %v100 = vld [vmem:[#allocation3 + $0x18] sm:$0xff]
    %v101 = vunpack.c.l.s8.bf16 %v97
    %v102 = vunpack.c.h.s8.bf16 %v97
    %v103 = vunpack.c.l.s8.bf16 %v98
    %v104 = vunpack.c.h.s8.bf16 %v98
    %v105 = vunpack.c.l.s8.bf16 %v99
    %v106 = vunpack.c.h.s8.bf16 %v99
    %v107 = vunpack.c.l.s8.bf16 %v100
    %v108 = vunpack.c.h.s8.bf16 %v100
    %s109 = smul.u32 0, 128
    %s110 = sshra.s32 %s109, 3
    %s111 = sand.u32 %s109, 7
    %s112 = smul.addr %s110, 4
    %s113 = scalar_lea.vmem [#allocation6], %s112
    %v114 = vld [vmem:[%s113] sm:$0xf]
    %v115 = vld [vmem:[%s113 + $0x4] sm:$0xf]
    %v116 = vld [vmem:[%s113 + $0x8] sm:$0xf]
    %v117 = vld [vmem:[%s113 + $0xc] sm:$0xf]
    %v118 = vld [vmem:[%s113 + $0x10] sm:$0xf]
    %v119 = vld [vmem:[%s113 + $0x14] sm:$0xf]
    %v120 = vld [vmem:[%s113 + $0x18] sm:$0xf]
    %v121 = vld [vmem:[%s113 + $0x1c] sm:$0xf]
    %v122 = vld [vmem:[%s113 + $0x20] sm:$0xf]
    %v123 = vld [vmem:[%s113 + $0x24] sm:$0xf]
    %v124 = vld [vmem:[%s113 + $0x28] sm:$0xf]
    %v125 = vld [vmem:[%s113 + $0x2c] sm:$0xf]
    %v126 = vld [vmem:[%s113 + $0x30] sm:$0xf]
    %v127 = vld [vmem:[%s113 + $0x34] sm:$0xf]
    %v128 = vld [vmem:[%s113 + $0x38] sm:$0xf]
    %v129 = vld [vmem:[%s113 + $0x3c] sm:$0xf]
    %v130 = vld [vmem:[#allocation2] sm:$0xff]
    %v131 = vld [vmem:[#allocation2 + $0x8] sm:$0xff]
    %v132 = vld [vmem:[#allocation2 + $0x10] sm:$0xff]
    %v133 = vld [vmem:[#allocation2 + $0x18] sm:$0xff]
    %v134 = vld [vmem:[#allocation2 + $0x20] sm:$0xff]
    %v135 = vld [vmem:[#allocation2 + $0x28] sm:$0xff]
    %v136 = vld [vmem:[#allocation2 + $0x30] sm:$0xff]
    %v137 = vld [vmem:[#allocation2 + $0x38] sm:$0xff]
    %v138 = vld [vmem:[#allocation2 + $0x40] sm:$0xff]
    %v139 = vld [vmem:[#allocation2 + $0x48] sm:$0xff]
    %v140 = vld [vmem:[#allocation2 + $0x50] sm:$0xff]
    %v141 = vld [vmem:[#allocation2 + $0x58] sm:$0xff]
    %v142 = vld [vmem:[#allocation2 + $0x60] sm:$0xff]
    %v143 = vld [vmem:[#allocation2 + $0x68] sm:$0xff]
    %v144 = vld [vmem:[#allocation2 + $0x70] sm:$0xff]
    %v145 = vld [vmem:[#allocation2 + $0x78] sm:$0xff]
    %v162 = vunpack.c.l.b16 %v114
    %v163 = vunpack.c.l.b16 %v115
    %v164 = vunpack.c.l.b16 %v116
    %v165 = vunpack.c.l.b16 %v117
    %v166 = vunpack.c.l.b16 %v118
    %v167 = vunpack.c.l.b16 %v119
    %v168 = vunpack.c.l.b16 %v120
    %v169 = vunpack.c.l.b16 %v121
    %v170 = vunpack.c.l.b16 %v122
    %v171 = vunpack.c.l.b16 %v123
    %v172 = vunpack.c.l.b16 %v124
    %v173 = vunpack.c.l.b16 %v125
    %v174 = vunpack.c.l.b16 %v126
    %v175 = vunpack.c.l.b16 %v127
    %v176 = vunpack.c.l.b16 %v128
    %v177 = vunpack.c.l.b16 %v129
    %v178 = vpack.c.b16 %v163, %v162
    %v179 = vpack.c.b16 %v165, %v164
    %v180 = vpack.c.b16 %v167, %v166
    %v181 = vpack.c.b16 %v169, %v168
    %v182 = vpack.c.b16 %v171, %v170
    %v183 = vpack.c.b16 %v173, %v172
    %v184 = vpack.c.b16 %v175, %v174
    %v185 = vpack.c.b16 %v177, %v176
    %194 = vmatprep.subr.bf16.mxu0 0
    %195 = vmatpush1.bf16.msra.mxu0 %v178
    %196 = vmatprep.subr.bf16.mxu0 0
    %197 = vmatpush1.bf16.msra.mxu0 %v179
    %198 = vmatprep.subr.bf16.mxu0 0
    %199 = vmatpush1.bf16.msra.mxu0 %v180
    %200 = vmatprep.subr.bf16.mxu0 0
    %201 = vmatpush1.bf16.msra.mxu0 %v181
    %202 = vmatprep.subr.bf16.mxu0 0
    %203 = vmatpush1.bf16.msra.mxu0 %v182
    %204 = vmatprep.subr.bf16.mxu0 0
    %205 = vmatpush1.bf16.msra.mxu0 %v183
    %206 = vmatprep.subr.bf16.mxu0 0
    %207 = vmatpush1.bf16.msra.mxu0 %v184
    %208 = vmatprep.subr.bf16.mxu0 0
    %209 = vmatpush1.bf16.msra.mxu0 %v185
    %210 = vmatprep.subr.bf16.mxu0 0
    %211 = vmatpush1.bf16.msra.mxu0 0
    %212 = vmatprep.subr.bf16.mxu0 0
    %213 = vmatpush1.bf16.msra.mxu0 0
    %214 = vmatprep.subr.bf16.mxu0 0
    %215 = vmatpush1.bf16.msra.mxu0 0
    %216 = vmatprep.subr.bf16.mxu0 0
    %217 = vmatpush1.bf16.msra.mxu0 0
    %218 = vmatprep.subr.bf16.mxu0 0
    %219 = vmatpush1.bf16.msra.mxu0 0
    %220 = vmatprep.subr.bf16.mxu0 0
    %221 = vmatpush1.bf16.msra.mxu0 0
    %222 = vmatprep.subr.bf16.mxu0 0
    %223 = vmatpush1.bf16.msra.mxu0 0
    %224 = vmatprep.subr.bf16.mxu0 0
    %225 = vmatpush1.bf16.msra.mxu0 0
    %226 = vmatprep.mubr.bf16.mxu0 0
    %227 = vmatmul.mubr.bf16.gmra.mrb[0].mxu0 %v101
    %v228 = vpop.f32.mrb[0].mxu0
    %v229 = vadd.f32 0.0, %v228
    %v230 = vpop.f32.mrb[0].mxu0
    %v231 = vpop.f32.mrb[0].mxu0
    %v232 = vadd.f32 0.0, %v231
    %v233 = vpop.f32.mrb[0].mxu0
    %234 = vmatprep.mubr.bf16.mxu0 0
    %235 = vmatmul.mubr.bf16.gmra.mrb[0].mxu0 %v102
    %v236 = vpop.f32.mrb[0].mxu0
    %v237 = vadd.f32 0.0, %v236
    %v238 = vpop.f32.mrb[0].mxu0
    %v239 = vpop.f32.mrb[0].mxu0
    %v240 = vadd.f32 0.0, %v239
    %v241 = vpop.f32.mrb[0].mxu0
    %242 = vmatprep.mubr.bf16.mxu0 0
    %243 = vmatmul.mubr.bf16.gmra.mrb[0].mxu0 %v103
    %v244 = vpop.f32.mrb[0].mxu0
    %v245 = vadd.f32 0.0, %v244
    %v246 = vpop.f32.mrb[0].mxu0
    %v247 = vpop.f32.mrb[0].mxu0
    %v248 = vadd.f32 0.0, %v247
    %v249 = vpop.f32.mrb[0].mxu0
    %250 = vmatprep.mubr.bf16.mxu0 0
    %251 = vmatmul.mubr.bf16.gmra.mrb[0].mxu0 %v104
    %v252 = vpop.f32.mrb[0].mxu0
    %v253 = vadd.f32 0.0, %v252
    %v254 = vpop.f32.mrb[0].mxu0
    %v255 = vpop.f32.mrb[0].mxu0
    %v256 = vadd.f32 0.0, %v255
    %v257 = vpop.f32.mrb[0].mxu0
    %258 = vmatprep.mubr.bf16.mxu0 0
    %259 = vmatmul.mubr.bf16.gmra.mrb[0].mxu0 %v105
    %v260 = vpop.f32.mrb[0].mxu0
    %v261 = vadd.f32 0.0, %v260
    %v262 = vpop.f32.mrb[0].mxu0
    %v263 = vpop.f32.mrb[0].mxu0
    %v264 = vadd.f32 0.0, %v263
    %v265 = vpop.f32.mrb[0].mxu0
    %266 = vmatprep.mubr.bf16.mxu0 0
    %267 = vmatmul.mubr.bf16.gmra.mrb[0].mxu0 %v106
    %v268 = vpop.f32.mrb[0].mxu0
    %v269 = vadd.f32 0.0, %v268
    %v270 = vpop.f32.mrb[0].mxu0
    %v271 = vpop.f32.mrb[0].mxu0
    %v272 = vadd.f32 0.0, %v271
    %v273 = vpop.f32.mrb[0].mxu0
    %274 = vmatprep.mubr.bf16.mxu0 0
    %275 = vmatmul.mubr.bf16.gmra.mrb[0].mxu0 %v107
    %v276 = vpop.f32.mrb[0].mxu0
    %v277 = vadd.f32 0.0, %v276
    %v278 = vpop.f32.mrb[0].mxu0
    %v279 = vpop.f32.mrb[0].mxu0
    %v280 = vadd.f32 0.0, %v279
    %v281 = vpop.f32.mrb[0].mxu0
    %282 = vmatprep.mubr.bf16.mxu0 0
    %283 = vmatmul.mubr.bf16.gmra.mrb[0].mxu0 %v108
    %v284 = vpop.f32.mrb[0].mxu0
    %v285 = vadd.f32 0.0, %v284
    %v286 = vpop.f32.mrb[0].mxu0
    %v287 = vpop.f32.mrb[0].mxu0
    %v288 = vadd.f32 0.0, %v287
    %v289 = vpop.f32.mrb[0].mxu0
    %290 = vdwg.mxu0
    %v291 = vadd.f32 %v130, %v229
    %v292 = vadd.f32 %v131, %v232
    %v293 = vadd.f32 %v132, %v237
    %v294 = vadd.f32 %v133, %v240
    %v295 = vadd.f32 %v134, %v245
    %v296 = vadd.f32 %v135, %v248
    %v297 = vadd.f32 %v136, %v253
    %v298 = vadd.f32 %v137, %v256
    %v299 = vadd.f32 %v138, %v261
    %v300 = vadd.f32 %v139, %v264
    %v301 = vadd.f32 %v140, %v269
    %v302 = vadd.f32 %v141, %v272
    %v303 = vadd.f32 %v142, %v277
    %v304 = vadd.f32 %v143, %v280
    %v305 = vadd.f32 %v144, %v285
    %v306 = vadd.f32 %v145, %v288
    %307 = vst [vmem:[#allocation2] sm:$0xff] %v291
    %308 = vst [vmem:[#allocation2 + $0x8] sm:$0xff] %v292
    %309 = vst [vmem:[#allocation2 + $0x10] sm:$0xff] %v293
    %310 = vst [vmem:[#allocation2 + $0x18] sm:$0xff] %v294
    %311 = vst [vmem:[#allocation2 + $0x20] sm:$0xff] %v295
    %312 = vst [vmem:[#allocation2 + $0x28] sm:$0xff] %v296
    %313 = vst [vmem:[#allocation2 + $0x30] sm:$0xff] %v297
    %314 = vst [vmem:[#allocation2 + $0x38] sm:$0xff] %v298
    %315 = vst [vmem:[#allocation2 + $0x40] sm:$0xff] %v299
    %316 = vst [vmem:[#allocation2 + $0x48] sm:$0xff] %v300
    %317 = vst [vmem:[#allocation2 + $0x50] sm:$0xff] %v301
    %318 = vst [vmem:[#allocation2 + $0x58] sm:$0xff] %v302
    %319 = vst [vmem:[#allocation2 + $0x60] sm:$0xff] %v303
    %320 = vst [vmem:[#allocation2 + $0x68] sm:$0xff] %v304
    %321 = vst [vmem:[#allocation2 + $0x70] sm:$0xff] %v305
    %322 = vst [vmem:[#allocation2 + $0x78] sm:$0xff] %v306
    // Predicated region
    $region42: #{tpu_custom_call.1} parent=1 // pred_check
      %p323 = pneg %p77
    $region43: #{tpu_custom_call.1} parent=1 // pred_check_branch
      %325 = sbr.rel (%p323) target = $region45
    $region44: #{tpu_custom_call.1} parent=1 // pred_region
      %v326 = vld [vmem:[#allocation8] sm:$0xf]
      %v327 = vld [vmem:[#allocation8 + $0x4] sm:$0xf]
      %v328 = vld [vmem:[#allocation8 + $0x8] sm:$0xf]
      %v329 = vld [vmem:[#allocation8 + $0xc] sm:$0xf]
      %v330 = vld [vmem:[#allocation8 + $0x10] sm:$0xf]
      %v331 = vld [vmem:[#allocation8 + $0x14] sm:$0xf]
      %v332 = vld [vmem:[#allocation8 + $0x18] sm:$0xf]
      %v333 = vld [vmem:[#allocation8 + $0x1c] sm:$0xf]
      %v334 = vld [vmem:[#allocation8 + $0x20] sm:$0xf]
      %v335 = vld [vmem:[#allocation8 + $0x24] sm:$0xf]
      %v336 = vld [vmem:[#allocation8 + $0x28] sm:$0xf]
      %v337 = vld [vmem:[#allocation8 + $0x2c] sm:$0xf]
      %v338 = vld [vmem:[#allocation8 + $0x30] sm:$0xf]
      %v339 = vld [vmem:[#allocation8 + $0x34] sm:$0xf]
      %v340 = vld [vmem:[#allocation8 + $0x38] sm:$0xf]
      %v341 = vld [vmem:[#allocation8 + $0x3c] sm:$0xf]
      %v342 = vld [vmem:[#allocation2] sm:$0xff]
      %v343 = vld [vmem:[#allocation2 + $0x8] sm:$0xff]
      %v344 = vld [vmem:[#allocation2 + $0x10] sm:$0xff]
      %v345 = vld [vmem:[#allocation2 + $0x18] sm:$0xff]
      %v346 = vld [vmem:[#allocation2 + $0x20] sm:$0xff]
      %v347 = vld [vmem:[#allocation2 + $0x28] sm:$0xff]
      %v348 = vld [vmem:[#allocation2 + $0x30] sm:$0xff]
      %v349 = vld [vmem:[#allocation2 + $0x38] sm:$0xff]
      %v350 = vld [vmem:[#allocation2 + $0x40] sm:$0xff]
      %v351 = vld [vmem:[#allocation2 + $0x48] sm:$0xff]
      %v352 = vld [vmem:[#allocation2 + $0x50] sm:$0xff]
      %v353 = vld [vmem:[#allocation2 + $0x58] sm:$0xff]
      %v354 = vld [vmem:[#allocation2 + $0x60] sm:$0xff]
      %v355 = vld [vmem:[#allocation2 + $0x68] sm:$0xff]
      %v356 = vld [vmem:[#allocation2 + $0x70] sm:$0xff]
      %v357 = vld [vmem:[#allocation2 + $0x78] sm:$0xff]
      %v358 = vpack.c.bf16 %v343, %v342
      %v359 = vpack.c.bf16 %v345, %v344
      %v360 = vpack.c.bf16 %v347, %v346
      %v361 = vpack.c.bf16 %v349, %v348
      %v362 = vpack.c.bf16 %v351, %v350
      %v363 = vpack.c.bf16 %v353, %v352
      %v364 = vpack.c.bf16 %v355, %v354
      %v365 = vpack.c.bf16 %v357, %v356
      %v382 = vunpack.c.l.b16 %v326
      %v383 = vunpack.c.l.b16 %v327
      %v384 = vunpack.c.l.b16 %v328
      %v385 = vunpack.c.l.b16 %v329
      %v386 = vunpack.c.l.b16 %v330
      %v387 = vunpack.c.l.b16 %v331
      %v388 = vunpack.c.l.b16 %v332
      %v389 = vunpack.c.l.b16 %v333
      %v390 = vunpack.c.l.b16 %v334
      %v391 = vunpack.c.l.b16 %v335
      %v392 = vunpack.c.l.b16 %v336
      %v393 = vunpack.c.l.b16 %v337
      %v394 = vunpack.c.l.b16 %v338
      %v395 = vunpack.c.l.b16 %v339
      %v396 = vunpack.c.l.b16 %v340
      %v397 = vunpack.c.l.b16 %v341
      %v398 = vpack.c.b16 %v383, %v382
      %v399 = vpack.c.b16 %v385, %v384
      %v400 = vpack.c.b16 %v387, %v386
      %v401 = vpack.c.b16 %v389, %v388
      %v402 = vpack.c.b16 %v391, %v390
      %v403 = vpack.c.b16 %v393, %v392
      %v404 = vpack.c.b16 %v395, %v394
      %v405 = vpack.c.b16 %v397, %v396
      %v414 = vld [vmem:[#allocation9] sm:$0xf]
      %v415 = vld [vmem:[#allocation9 + $0x4] sm:$0xf]
      %v416 = vld [vmem:[#allocation9 + $0x8] sm:$0xf]
      %v417 = vld [vmem:[#allocation9 + $0xc] sm:$0xf]
      %v418 = vld [vmem:[#allocation9 + $0x10] sm:$0xf]
      %v419 = vld [vmem:[#allocation9 + $0x14] sm:$0xf]
      %v420 = vld [vmem:[#allocation9 + $0x18] sm:$0xf]
      %v421 = vld [vmem:[#allocation9 + $0x1c] sm:$0xf]
      %v422 = vld [vmem:[#allocation9 + $0x20] sm:$0xf]
      %v423 = vld [vmem:[#allocation9 + $0x24] sm:$0xf]
      %v424 = vld [vmem:[#allocation9 + $0x28] sm:$0xf]
      %v425 = vld [vmem:[#allocation9 + $0x2c] sm:$0xf]
      %v426 = vld [vmem:[#allocation9 + $0x30] sm:$0xf]
      %v427 = vld [vmem:[#allocation9 + $0x34] sm:$0xf]
      %v428 = vld [vmem:[#allocation9 + $0x38] sm:$0xf]
      %v429 = vld [vmem:[#allocation9 + $0x3c] sm:$0xf]
      %v430 = vld [vmem:[#allocation9 + $0x40] sm:$0xf]
      %v431 = vld [vmem:[#allocation9 + $0x44] sm:$0xf]
      %v432 = vld [vmem:[#allocation9 + $0x48] sm:$0xf]
      %v433 = vld [vmem:[#allocation9 + $0x4c] sm:$0xf]
      %v434 = vld [vmem:[#allocation9 + $0x50] sm:$0xf]
      %v435 = vld [vmem:[#allocation9 + $0x54] sm:$0xf]
      %v436 = vld [vmem:[#allocation9 + $0x58] sm:$0xf]
      %v437 = vld [vmem:[#allocation9 + $0x5c] sm:$0xf]
      %v438 = vld [vmem:[#allocation9 + $0x60] sm:$0xf]
      %v439 = vld [vmem:[#allocation9 + $0x64] sm:$0xf]
      %v440 = vld [vmem:[#allocation9 + $0x68] sm:$0xf]
      %v441 = vld [vmem:[#allocation9 + $0x6c] sm:$0xf]
      %v442 = vld [vmem:[#allocation9 + $0x70] sm:$0xf]
      %v443 = vld [vmem:[#allocation9 + $0x74] sm:$0xf]
      %v444 = vld [vmem:[#allocation9 + $0x78] sm:$0xf]
      %v445 = vld [vmem:[#allocation9 + $0x7c] sm:$0xf]
      %v446 = vld [vmem:[%s4] sm:$0x1]
      %v448 = vlaneseq
      %v449 = vshrl.u32 %v448, 7
      %v450 = vsub.s32 0, %v449
      %v451 = vrot.slane %v446, %v450
      %v485 = vunpack.c.l.b16 %v414
      %v486 = vunpack.c.l.b16 %v415
      %v487 = vunpack.c.l.b16 %v416
      %v488 = vunpack.c.l.b16 %v417
      %v489 = vunpack.c.l.b16 %v418
      %v490 = vunpack.c.l.b16 %v419
      %v491 = vunpack.c.l.b16 %v420
      %v492 = vunpack.c.l.b16 %v421
      %v493 = vunpack.c.l.b16 %v422
      %v494 = vunpack.c.l.b16 %v423
      %v495 = vunpack.c.l.b16 %v424
      %v496 = vunpack.c.l.b16 %v425
      %v497 = vunpack.c.l.b16 %v426
      %v498 = vunpack.c.l.b16 %v427
      %v499 = vunpack.c.l.b16 %v428
      %v500 = vunpack.c.l.b16 %v429
      %v501 = vunpack.c.l.b16 %v430
      %v502 = vunpack.c.l.b16 %v431
      %v503 = vunpack.c.l.b16 %v432
      %v504 = vunpack.c.l.b16 %v433
      %v505 = vunpack.c.l.b16 %v434
      %v506 = vunpack.c.l.b16 %v435
      %v507 = vunpack.c.l.b16 %v436
      %v508 = vunpack.c.l.b16 %v437
      %v509 = vunpack.c.l.b16 %v438
      %v510 = vunpack.c.l.b16 %v439
      %v511 = vunpack.c.l.b16 %v440
      %v512 = vunpack.c.l.b16 %v441
      %v513 = vunpack.c.l.b16 %v442
      %v514 = vunpack.c.l.b16 %v443
      %v515 = vunpack.c.l.b16 %v444
      %v516 = vunpack.c.l.b16 %v445
      %v517 = vpack.c.b16 %v486, %v485
      %v518 = vpack.c.b16 %v488, %v487
      %v519 = vpack.c.b16 %v490, %v489
      %v520 = vpack.c.b16 %v492, %v491
      %v521 = vpack.c.b16 %v494, %v493
      %v522 = vpack.c.b16 %v496, %v495
      %v523 = vpack.c.b16 %v498, %v497
      %v524 = vpack.c.b16 %v500, %v499
      %v525 = vpack.c.b16 %v502, %v501
      %v526 = vpack.c.b16 %v504, %v503
      %v527 = vpack.c.b16 %v506, %v505
      %v528 = vpack.c.b16 %v508, %v507
      %v529 = vpack.c.b16 %v510, %v509
      %v530 = vpack.c.b16 %v512, %v511
      %v531 = vpack.c.b16 %v514, %v513
      %v532 = vpack.c.b16 %v516, %v515
      %549 = vmatprep.subr.bf16.mxu0 0
      %550 = vmatpush1.bf16.msra.mxu0 %v517
      %551 = vmatprep.subr.bf16.mxu0 0
      %552 = vmatpush1.bf16.msra.mxu0 %v518
      %553 = vmatprep.subr.bf16.mxu0 0
      %554 = vmatpush1.bf16.msra.mxu0 %v519
      %555 = vmatprep.subr.bf16.mxu0 0
      %556 = vmatpush1.bf16.msra.mxu0 %v520
      %557 = vmatprep.subr.bf16.mxu0 0
      %558 = vmatpush1.bf16.msra.mxu0 %v521
      %559 = vmatprep.subr.bf16.mxu0 0
      %560 = vmatpush1.bf16.msra.mxu0 %v522
      %561 = vmatprep.subr.bf16.mxu0 0
      %562 = vmatpush1.bf16.msra.mxu0 %v523
      %563 = vmatprep.subr.bf16.mxu0 0
      %564 = vmatpush1.bf16.msra.mxu0 %v524
      %565 = vmatprep.subr.bf16.mxu0 0
      %566 = vmatpush1.bf16.msra.mxu0 %v525
      %567 = vmatprep.subr.bf16.mxu0 0
      %568 = vmatpush1.bf16.msra.mxu0 %v526
      %569 = vmatprep.subr.bf16.mxu0 0
      %570 = vmatpush1.bf16.msra.mxu0 %v527
      %571 = vmatprep.subr.bf16.mxu0 0
      %572 = vmatpush1.bf16.msra.mxu0 %v528
      %573 = vmatprep.subr.bf16.mxu0 0
      %574 = vmatpush1.bf16.msra.mxu0 %v529
      %575 = vmatprep.subr.bf16.mxu0 0
      %576 = vmatpush1.bf16.msra.mxu0 %v530
      %577 = vmatprep.subr.bf16.mxu0 0
      %578 = vmatpush1.bf16.msra.mxu0 %v531
      %579 = vmatprep.subr.bf16.mxu0 0
      %580 = vmatpush1.bf16.msra.mxu0 %v532
      %581 = vmatprep.mubr.bf16.mxu0 %v358
      %582 = vmatmul.mubr.bf16.gmra.mrb[0].mxu0 %v398
      %v583 = vpop.f32.mrb[0].mxu0
      %v584 = vadd.f32 %v451, %v583
      %v585 = vpop.f32.mrb[0].mxu0
      %v586 = vpop.f32.mrb[0].mxu0
      %v587 = vadd.f32 %v451, %v586
      %v588 = vpop.f32.mrb[0].mxu0
      %589 = vmatprep.mubr.bf16.mxu0 %v359
      %590 = vmatmul.mubr.bf16.gmra.mrb[0].mxu0 %v399
      %v591 = vpop.f32.mrb[0].mxu0
      %v592 = vadd.f32 %v451, %v591
      %v593 = vpop.f32.mrb[0].mxu0
      %v594 = vpop.f32.mrb[0].mxu0
      %v595 = vadd.f32 %v451, %v594
      %v596 = vpop.f32.mrb[0].mxu0
      %597 = vmatprep.mubr.bf16.mxu0 %v360
      %598 = vmatmul.mubr.bf16.gmra.mrb[0].mxu0 %v400
      %v599 = vpop.f32.mrb[0].mxu0
      %v600 = vadd.f32 %v451, %v599
      %v601 = vpop.f32.mrb[0].mxu0
      %v602 = vpop.f32.mrb[0].mxu0
      %v603 = vadd.f32 %v451, %v602
      %v604 = vpop.f32.mrb[0].mxu0
      %605 = vmatprep.mubr.bf16.mxu0 %v361
      %606 = vmatmul.mubr.bf16.gmra.mrb[0].mxu0 %v401
      %v607 = vpop.f32.mrb[0].mxu0
      %v608 = vadd.f32 %v451, %v607
      %v609 = vpop.f32.mrb[0].mxu0
      %v610 = vpop.f32.mrb[0].mxu0
      %v611 = vadd.f32 %v451, %v610
      %v612 = vpop.f32.mrb[0].mxu0
      %613 = vmatprep.mubr.bf16.mxu0 %v362
      %614 = vmatmul.mubr.bf16.gmra.mrb[0].mxu0 %v402
      %v615 = vpop.f32.mrb[0].mxu0
      %v616 = vadd.f32 %v451, %v615
      %v617 = vpop.f32.mrb[0].mxu0
      %v618 = vpop.f32.mrb[0].mxu0
      %v619 = vadd.f32 %v451, %v618
      %v620 = vpop.f32.mrb[0].mxu0
      %621 = vmatprep.mubr.bf16.mxu0 %v363
      %622 = vmatmul.mubr.bf16.gmra.mrb[0].mxu0 %v403
      %v623 = vpop.f32.mrb[0].mxu0
      %v624 = vadd.f32 %v451, %v623
      %v625 = vpop.f32.mrb[0].mxu0
      %v626 = vpop.f32.mrb[0].mxu0
      %v627 = vadd.f32 %v451, %v626
      %v628 = vpop.f32.mrb[0].mxu0
      %629 = vmatprep.mubr.bf16.mxu0 %v364
      %630 = vmatmul.mubr.bf16.gmra.mrb[0].mxu0 %v404
      %v631 = vpop.f32.mrb[0].mxu0
      %v632 = vadd.f32 %v451, %v631
      %v633 = vpop.f32.mrb[0].mxu0
      %v634 = vpop.f32.mrb[0].mxu0
      %v635 = vadd.f32 %v451, %v634
      %v636 = vpop.f32.mrb[0].mxu0
      %637 = vmatprep.mubr.bf16.mxu0 %v365
      %638 = vmatmul.mubr.bf16.gmra.mrb[0].mxu0 %v405
      %v639 = vpop.f32.mrb[0].mxu0
      %v640 = vadd.f32 %v451, %v639
      %v641 = vpop.f32.mrb[0].mxu0
      %v642 = vpop.f32.mrb[0].mxu0
      %v643 = vadd.f32 %v451, %v642
      %v644 = vpop.f32.mrb[0].mxu0
      %645 = vdwg.mxu0
      %v646 = vmax.f32 %v584, 0.0
      %v647 = vmax.f32 %v587, 0.0
      %v648 = vmax.f32 %v592, 0.0
      %v649 = vmax.f32 %v595, 0.0
      %v650 = vmax.f32 %v600, 0.0
      %v651 = vmax.f32 %v603, 0.0
      %v652 = vmax.f32 %v608, 0.0
      %v653 = vmax.f32 %v611, 0.0
      %v654 = vmax.f32 %v616, 0.0
      %v655 = vmax.f32 %v619, 0.0
      %v656 = vmax.f32 %v624, 0.0
      %v657 = vmax.f32 %v627, 0.0
      %v658 = vmax.f32 %v632, 0.0
      %v659 = vmax.f32 %v635, 0.0
      %v660 = vmax.f32 %v640, 0.0
      %v661 = vmax.f32 %v643, 0.0
      %v662 = vpack.c.bf16 %v647, %v646
      %v663 = vpack.c.bf16 %v649, %v648
      %v664 = vpack.c.bf16 %v651, %v650
      %v665 = vpack.c.bf16 %v653, %v652
      %v666 = vpack.c.bf16 %v655, %v654
      %v667 = vpack.c.bf16 %v657, %v656
      %v668 = vpack.c.bf16 %v659, %v658
      %v669 = vpack.c.bf16 %v661, %v660
      %v678 = vunpack.c.l.b16 %v662
      %v679 = vunpack.c.h.b16 %v662
      %v680 = vunpack.c.l.b16 %v663
      %v681 = vunpack.c.h.b16 %v663
      %v682 = vunpack.c.l.b16 %v664
      %v683 = vunpack.c.h.b16 %v664
      %v684 = vunpack.c.l.b16 %v665
      %v685 = vunpack.c.h.b16 %v665
      %v686 = vunpack.c.l.b16 %v666
      %v687 = vunpack.c.h.b16 %v666
      %v688 = vunpack.c.l.b16 %v667
      %v689 = vunpack.c.h.b16 %v667
      %v690 = vunpack.c.l.b16 %v668
      %v691 = vunpack.c.h.b16 %v668
      %v692 = vunpack.c.l.b16 %v669
      %v693 = vunpack.c.h.b16 %v669
      %v694 = vpack.c.b16 %v678, %v678
      %v695 = vpack.c.b16 %v679, %v679
      %v696 = vpack.c.b16 %v680, %v680
      %v697 = vpack.c.b16 %v681, %v681
      %v698 = vpack.c.b16 %v682, %v682
      %v699 = vpack.c.b16 %v683, %v683
      %v700 = vpack.c.b16 %v684, %v684
      %v701 = vpack.c.b16 %v685, %v685
      %v702 = vpack.c.b16 %v686, %v686
      %v703 = vpack.c.b16 %v687, %v687
      %v704 = vpack.c.b16 %v688, %v688
      %v705 = vpack.c.b16 %v689, %v689
      %v706 = vpack.c.b16 %v690, %v690
      %v707 = vpack.c.b16 %v691, %v691
      %v708 = vpack.c.b16 %v692, %v692
      %v709 = vpack.c.b16 %v693, %v693
      %726 = vst [vmem:[#allocation11] sm:$0xf] %v694
      %727 = vst [vmem:[#allocation11 + $0x4] sm:$0xf] %v695
      %728 = vst [vmem:[#allocation11 + $0x8] sm:$0xf] %v696
      %729 = vst [vmem:[#allocation11 + $0xc] sm:$0xf] %v697
      %730 = vst [vmem:[#allocation11 + $0x10] sm:$0xf] %v698
      %731 = vst [vmem:[#allocation11 + $0x14] sm:$0xf] %v699
      %732 = vst [vmem:[#allocation11 + $0x18] sm:$0xf] %v700
      %733 = vst [vmem:[#allocation11 + $0x1c] sm:$0xf] %v701
      %734 = vst [vmem:[#allocation11 + $0x20] sm:$0xf] %v702
      %735 = vst [vmem:[#allocation11 + $0x24] sm:$0xf] %v703
      %736 = vst [vmem:[#allocation11 + $0x28] sm:$0xf] %v704
      %737 = vst [vmem:[#allocation11 + $0x2c] sm:$0xf] %v705
      %738 = vst [vmem:[#allocation11 + $0x30] sm:$0xf] %v706
      %739 = vst [vmem:[#allocation11 + $0x34] sm:$0xf] %v707
      %740 = vst [vmem:[#allocation11 + $0x38] sm:$0xf] %v708
      %741 = vst [vmem:[#allocation11 + $0x3c] sm:$0xf] %v709
    $region45: #{tpu_custom_call.1} parent=1 // pred_fallthru
      _
    // Predicated region
    $region46: #{tpu_custom_call.1} parent=1 // pred_check
      _
    $region47: #{tpu_custom_call.1} parent=1 // pred_check_branch
      %743 = sbr.rel (0) target = $region49
    $region48: #{tpu_custom_call.1} parent=1 // pred_region
      %s745 = ssub.s32 1024, 1024
      %746 = vsyncadd [#allocation5], %s745
      %s747 = sshll.u32 [#allocation11], 4
      %s748 = int_to_ptr.vmem [resolvable:$true] %s747
      %753 = dma.vmem_to_hbm [thread:$0]  %s748, 1024, %s5, [#allocation5], 64, 64, 4
    $region49: #{tpu_custom_call.1} parent=1 // pred_fallthru
      _
    // Predicated region
    $region50: #{tpu_custom_call.1} parent=1 // pred_check
      _
    $region51: #{tpu_custom_call.1} parent=1 // pred_check_branch
      %755 = sbr.rel (0) target = $region53
    $region52: #{tpu_custom_call.1} parent=1 // pred_region
      %756 = dma.done [#allocation5], 1024
    $region53: #{tpu_custom_call.1} parent=1 // pred_fallthru
      _
    %757 = vsyncpa [#allocation4], 1
    %758 = vsyncpa [#allocation7], 1
    %759 = vsyncpa [#allocation10], 1
    %760 = vsyncpa [#allocation5], 1

</llo_original>
